<compile_context>
chip_gen: v5e
topology: v5e:2x2
jax: 0.10.0
libtpu: 0.0.40
codegen_flags: <defaults>
</compile_context>

<pallas_src>
import jax
import jax.numpy as jnp
from jax.experimental import pallas as pl
from jax.experimental.pallas import tpu as pltpu


def _round_up(x, m):
    return ((x + m - 1) // m) * m


def _make_kernel(S, ts, ns, seq_masked):
    def kernel(b_ref, k_ref, q_ref, w_ref, out_ref):
        # b_ref:   SMEM (1,)          f32   fc1 bias
        # k_ref:   VMEM (bt, ts, D)   native dtype
        # q_ref:   VMEM (bt, ts, D)   native dtype
        # w_ref:   VMEM (1, D)        f32   fc1 weight (lane-dense)
        # out_ref: VMEM (bt, 8, 128)  f32   running-max accumulator, resident
        #          across the seq ("arbitrary") grid axis.
        sp = pl.program_id(1)  # seq-split index (parallel)
        si = pl.program_id(2)  # seq step within the split (reduction)

        @pl.when(si == 0)
        def _init():
            out_ref[...] = jnp.full(out_ref.shape, -jnp.inf, dtype=out_ref.dtype)

        # Elementwise product in the native dtype on the VPU; the f32 weight
        # multiply promotes to f32 and the D contraction is a lane reduce on
        # the XLU.  Fully hidden under the HBM stream on all generations.
        prod = k_ref[...] * q_ref[...]                      # (bt, ts, D)
        logits = jnp.sum(prod * w_ref[...], axis=-1)        # (bt, ts) f32

        if seq_masked:
            start = (sp * ns + si) * ts
            row = start + jax.lax.broadcasted_iota(jnp.int32, logits.shape, 1)
            logits = jnp.where(row < S, logits, -jnp.inf)

        tile_max = jnp.max(logits, axis=1)[:, None, None]   # (bt, 1, 1)
        out_ref[...] = jnp.maximum(out_ref[...], tile_max)

        @pl.when(si == pl.num_programs(2) - 1)
        def _finalize():
            # max(x + b) == max(x) + b: add the bias once after the reduction.
            out_ref[...] = out_ref[...] + b_ref[0]

    return kernel


def _choose_tiles(B, S, D, itemsize, block_rows):
    # Dtype-aware minimum sublane tile: (8,128) f32 / (16,128) bf16 / (32,128) int8.
    sub = max(8, 32 // itemsize)
    if block_rows is None:
        # ~4 MiB per input operand per grid step (x2 operands x2 buffers
        # ~= 16 MiB VMEM): 2048 rows f32, 4096 rows bf16.  Amortizes the
        # ~0.35us/step overhead to <10% even on v7x-class HBM.
        block_rows = (4 << 20) // (D * itemsize)
    max_rows = max(sub, _round_up(block_rows, sub))

    if S >= max_rows:
        ts, bt = max_rows, 1                 # long sequences: stream seq tiles
    else:
        ts = _round_up(S, sub)               # short sequences: whole (padded) seq
        bt = max(1, max_rows // ts)          # ... and fold several batch rows/step
        if bt >= B:
            bt = B                           # block spans the full batch dim
        elif bt >= 8:
            bt = (bt // 8) * 8               # keep sublane-aligned batch blocks
        else:
            bt = 1                           # mid-size S: plain per-row streaming
    return bt, ts


def neuralnet_forward(k, q, w, b, *, block_rows=None):
    B, S, D = k.shape
    assert q.shape == (B, S, D), (q.shape, k.shape)
    assert w.shape == (1, D), w.shape
    assert b.shape == (1,), b.shape

    itemsize = jnp.dtype(k.dtype).itemsize
    bt, ts = _choose_tiles(B, S, D, itemsize, block_rows)

    nb = _round_up(B, bt) // bt              # batch blocks
    ns_total = pl.cdiv(S, ts)                # seq blocks
    # 2-way seq split (second "parallel" axis) when batch alone cannot feed
    # both TensorCores on v7x; partial maxes are combined in the wrapper.
    nsplit = 2 if (nb == 1 and ns_total >= 2) else 1
    ns = pl.cdiv(ns_total, nsplit)           # seq steps per split

    B_pad = nb * bt
    S_pad = nsplit * ns * ts
    if (B_pad, S_pad) != (B, S):
        pad = ((0, B_pad - B), (0, S_pad - S), (0, 0))
        k_in = jnp.pad(k, pad)
        q_in = jnp.pad(q, pad)
    else:
        k_in, q_in = k, q

    w_row = w.reshape(1, D).astype(jnp.float32)
    b_smem = b.reshape(1).astype(jnp.float32)

    kernel = _make_kernel(S, ts, ns, seq_masked=(S_pad != S))

    # Purely memory-bound: bytes dominate, flops are filler.
    cost = pl.CostEstimate(
        flops=3 * B_pad * S_pad * D,
        transcendentals=0,
        bytes_accessed=(2 * B_pad * S_pad * D * itemsize
                        + D * 4 + B_pad * nsplit * 8 * 128 * 4),
    )

    block_bytes = bt * ts * D * itemsize
    vmem_limit = int(min(64 << 20, max(32 << 20, 4 * block_bytes + (8 << 20))))

    out_padded = pl.pallas_call(
        kernel,
        out_shape=jax.ShapeDtypeStruct((B_pad, nsplit, 8, 128), jnp.float32),
        grid=(nb, nsplit, ns),
        in_specs=[
            pl.BlockSpec(memory_space=pltpu.MemorySpace.SMEM),               # bias
            pl.BlockSpec((bt, ts, D), lambda bi, sp, si: (bi, sp * ns + si, 0)),  # k tile
            pl.BlockSpec((bt, ts, D), lambda bi, sp, si: (bi, sp * ns + si, 0)),  # q tile
            pl.BlockSpec((1, D), lambda bi, sp, si: (0, 0)),                 # weight (resident)
        ],
        out_specs=pl.BlockSpec((bt, None, 8, 128), lambda bi, sp, si: (bi, sp, 0, 0)),
        compiler_params=pltpu.CompilerParams(
            dimension_semantics=("parallel", "parallel", "arbitrary"),
            vmem_limit_bytes=vmem_limit,
        ),
        cost_estimate=cost,
    )(b_smem, k_in, q_in, w_row)

    # (B_pad, nsplit, 8, 128) -> combine the partial maxes, drop padding -> (B, 1)
    out = jnp.max(out_padded, axis=1)[:B, 0, :1]
    return out.astype(k.dtype)


if __name__ == "__main__":
    D = 512  # fixed by Linear(512, 1)

    key = jax.random.PRNGKey(0)
    kk, kq, kw, kb = jax.random.split(key, 4)

    # PyTorch Linear default init: U(-1/sqrt(in_features), 1/sqrt(in_features)).
    bound = 1.0 / (D ** 0.5)
    w = jax.random.uniform(kw, (1, D), jnp.float32, -bound, bound)
    b = jax.random.uniform(kb, (1,), jnp.float32, -bound, bound)

    def ref_fn(kx, qx):
        x = (kx * qx).astype(jnp.float32)
        logits = jnp.einsum("bsd,d->bs", x, w[0]) + b[0]
        return jnp.max(logits, axis=1, keepdims=True)

    # Small shapes that exercise every code path:
    #   1) default tiling, batch-blocked, single step
    #   2) irregular S -> seq padding + -inf masking
    #   3) multi-step running max + 2-way seq split (B=1)
    #   4) multiple batch blocks + batch padding
    cases = [
        dict(B=2, S=16, block_rows=None),
        dict(B=5, S=12, block_rows=None),
        dict(B=1, S=40, block_rows=8),
        dict(B=20, S=8, block_rows=64),
    ]
    for c in cases:
        ck, cq = jax.random.split(jax.random.fold_in(kk, c["B"] * 1000 + c["S"]))
        k = jax.random.normal(ck, (c["B"], c["S"], D), jnp.float32)
        q = jax.random.normal(cq, (c["B"], c["S"], D), jnp.float32)

        out = jax.block_until_ready(
            neuralnet_forward(k, q, w, b, block_rows=c["block_rows"]))
        ref = ref_fn(k, q)

        assert out.shape == (c["B"], 1), (out.shape, c)
        assert jnp.allclose(out, ref, atol=1e-4, rtol=1e-4), (c, out, ref)

    print("KERNEL_OK")
</pallas_src>

<mosaic_0001>
module attributes {stable_mosaic.version = 11 : i64} {
  func.func @kernel(%arg0: i32, %arg1: i32, %arg2: i32, %arg3: memref<1xf32, #tpu.memory_space<smem>>, %arg4: memref<2x16x512xf32, #tpu.memory_space<vmem>>, %arg5: memref<2x16x512xf32, #tpu.memory_space<vmem>>, %arg6: memref<1x512xf32, #tpu.memory_space<vmem>>, %arg7: memref<2x1x8x128xf32, #tpu.memory_space<vmem>>) attributes {dimension_semantics = [#tpu.dimension_semantics<parallel>, #tpu.dimension_semantics<parallel>, #tpu.dimension_semantics<arbitrary>], iteration_bounds = array<i64: 1, 1, 1>, scalar_prefetch = 0 : i64, scratch_operands = 0 : i64, tpu.core_type = #tpu.core_type<tc>, window_params = [{transform_indices = @transform_0, window_bounds = array<i64: 1>}, {transform_indices = @transform_1, window_bounds = array<i64: 2, 16, 512>}, {transform_indices = @transform_2, window_bounds = array<i64: 2, 16, 512>}, {pipeline_mode = #tpu.pipeline_mode<synchronous>, transform_indices = @transform_3, window_bounds = array<i64: 1, 512>}, {transform_indices = @transform_4, window_bounds = array<i64: 2, 1, 8, 128>}]} {
    %c0_i32 = arith.constant 0 : i32
    %0 = arith.cmpi eq, %arg2, %c0_i32 : i32
    %1 = arith.extui %0 : i1 to i32
    %c0_i32_0 = arith.constant 0 : i32
    %2 = arith.cmpi ne, %1, %c0_i32_0 : i32
    scf.if %2 {
      %cst_19 = arith.constant 0xFF800000 : f32
      %23 = vector.broadcast %cst_19 : f32 to vector<2x8x128xf32>
      %c0_20 = arith.constant 0 : index
      %c0_21 = arith.constant 0 : index
      %c0_22 = arith.constant 0 : index
      %c0_23 = arith.constant 0 : index
      %24 = vector.load %arg7[%c0_20, %c0_21, %c0_22, %c0_23] : memref<2x1x8x128xf32, #tpu.memory_space<vmem>>, vector<2x1x8x128xf32>
      %25 = vector.shape_cast %24 : vector<2x1x8x128xf32> to vector<2x8x128xf32>
      %26 = vector.shape_cast %23 : vector<2x8x128xf32> to vector<2x1x8x128xf32>
      tpu.vector_store %arg7[%c0_20, %c0_21, %c0_22, %c0_23], %26 {strides = array<i32>} : memref<2x1x8x128xf32, #tpu.memory_space<vmem>>, vector<2x1x8x128xf32>,
    } else {
    }
    %c0 = arith.constant 0 : index
    %c0_1 = arith.constant 0 : index
    %c0_2 = arith.constant 0 : index
    %3 = vector.load %arg4[%c0, %c0_1, %c0_2] : memref<2x16x512xf32, #tpu.memory_space<vmem>>, vector<2x16x512xf32>
    %c0_3 = arith.constant 0 : index
    %c0_4 = arith.constant 0 : index
    %c0_5 = arith.constant 0 : index
    %4 = vector.load %arg5[%c0_3, %c0_4, %c0_5] : memref<2x16x512xf32, #tpu.memory_space<vmem>>, vector<2x16x512xf32>
    %5 = arith.mulf %3, %4 : vector<2x16x512xf32>
    %c0_6 = arith.constant 0 : index
    %c0_7 = arith.constant 0 : index
    %6 = vector.load %arg6[%c0_6, %c0_7] : memref<1x512xf32, #tpu.memory_space<vmem>>, vector<1x512xf32>
    %7 = vector.shape_cast %6 : vector<1x512xf32> to vector<1x1x512xf32>
    %8 = vector.broadcast %7 : vector<1x1x512xf32> to vector<2x16x512xf32>
    %9 = arith.mulf %5, %8 : vector<2x16x512xf32>
    %cst = arith.constant dense<0.000000e+00> : vector<2x16xf32>
    %10 = vector.multi_reduction <add>, %9, %cst [2] : vector<2x16x512xf32> to vector<2x16xf32>
    %cst_8 = arith.constant dense<0xFF800000> : vector<2xf32>
    %11 = vector.multi_reduction <maximumf>, %10, %cst_8 [1] : vector<2x16xf32> to vector<2xf32>
    %12 = vector.shape_cast %11 : vector<2xf32> to vector<2x1x1xf32>
    %c0_9 = arith.constant 0 : index
    %c0_10 = arith.constant 0 : index
    %c0_11 = arith.constant 0 : index
    %c0_12 = arith.constant 0 : index
    %13 = vector.load %arg7[%c0_9, %c0_10, %c0_11, %c0_12] : memref<2x1x8x128xf32, #tpu.memory_space<vmem>>, vector<2x1x8x128xf32>
    %14 = vector.shape_cast %13 : vector<2x1x8x128xf32> to vector<2x8x128xf32>
    %15 = vector.broadcast %12 : vector<2x1x1xf32> to vector<2x8x128xf32>
    %16 = arith.maximumf %14, %15 : vector<2x8x128xf32>
    %c0_13 = arith.constant 0 : index
    %c0_14 = arith.constant 0 : index
    %c0_15 = arith.constant 0 : index
    %c0_16 = arith.constant 0 : index
    %17 = vector.load %arg7[%c0_13, %c0_14, %c0_15, %c0_16] : memref<2x1x8x128xf32, #tpu.memory_space<vmem>>, vector<2x1x8x128xf32>
    %18 = vector.shape_cast %17 : vector<2x1x8x128xf32> to vector<2x8x128xf32>
    %19 = vector.shape_cast %16 : vector<2x8x128xf32> to vector<2x1x8x128xf32>
    tpu.vector_store %arg7[%c0_13, %c0_14, %c0_15, %c0_16], %19 {strides = array<i32>} : memref<2x1x8x128xf32, #tpu.memory_space<vmem>>, vector<2x1x8x128xf32>,
    %c0_i32_17 = arith.constant 0 : i32
    %20 = arith.cmpi eq, %arg2, %c0_i32_17 : i32
    %21 = arith.extui %20 : i1 to i32
    %c0_i32_18 = arith.constant 0 : i32
    %22 = arith.cmpi ne, %21, %c0_i32_18 : i32
    scf.if %22 {
      %c0_19 = arith.constant 0 : index
      %c0_20 = arith.constant 0 : index
      %c0_21 = arith.constant 0 : index
      %c0_22 = arith.constant 0 : index
      %23 = vector.load %arg7[%c0_19, %c0_20, %c0_21, %c0_22] : memref<2x1x8x128xf32, #tpu.memory_space<vmem>>, vector<2x1x8x128xf32>
      %24 = vector.shape_cast %23 : vector<2x1x8x128xf32> to vector<2x8x128xf32>
      %c0_23 = arith.constant 0 : index
      %25 = memref.load %arg3[%c0_23] : memref<1xf32, #tpu.memory_space<smem>>
      %26 = vector.broadcast %25 : f32 to vector<2x8x128xf32>
      %27 = arith.addf %24, %26 : vector<2x8x128xf32>
      %c0_24 = arith.constant 0 : index
      %c0_25 = arith.constant 0 : index
      %c0_26 = arith.constant 0 : index
      %c0_27 = arith.constant 0 : index
      %28 = vector.load %arg7[%c0_24, %c0_25, %c0_26, %c0_27] : memref<2x1x8x128xf32, #tpu.memory_space<vmem>>, vector<2x1x8x128xf32>
      %29 = vector.shape_cast %28 : vector<2x1x8x128xf32> to vector<2x8x128xf32>
      %30 = vector.shape_cast %27 : vector<2x8x128xf32> to vector<2x1x8x128xf32>
      tpu.vector_store %arg7[%c0_24, %c0_25, %c0_26, %c0_27], %30 {strides = array<i32>} : memref<2x1x8x128xf32, #tpu.memory_space<vmem>>, vector<2x1x8x128xf32>,
    } else {
    }
    return
  }
  func.func @transform_0(%arg0: i32, %arg1: i32, %arg2: i32) -> i32 {
    %c0_i32 = arith.constant 0 : i32
    %c0_i32_0 = arith.constant 0 : i32
    return %c0_i32 : i32
  }
  func.func @transform_1(%arg0: i32, %arg1: i32, %arg2: i32) -> (i32, i32, i32) {
    %c1_i32 = arith.constant 1 : i32
    %0 = arith.muli %arg1, %c1_i32 : i32
    %1 = arith.addi %0, %arg2 : i32
    %c0_i32 = arith.constant 0 : i32
    %c0_i32_0 = arith.constant 0 : i32
    return %arg0, %1, %c0_i32 : i32, i32, i32
  }
  func.func @transform_2(%arg0: i32, %arg1: i32, %arg2: i32) -> (i32, i32, i32) {
    %c1_i32 = arith.constant 1 : i32
    %0 = arith.muli %arg1, %c1_i32 : i32
    %1 = arith.addi %0, %arg2 : i32
    %c0_i32 = arith.constant 0 : i32
    %c0_i32_0 = arith.constant 0 : i32
    return %arg0, %1, %c0_i32 : i32, i32, i32
  }
  func.func @transform_3(%arg0: i32, %arg1: i32, %arg2: i32) -> (i32, i32) {
    %c0_i32 = arith.constant 0 : i32
    %c0_i32_0 = arith.constant 0 : i32
    %c0_i32_1 = arith.constant 0 : i32
    return %c0_i32, %c0_i32_0 : i32, i32
  }
  func.func @transform_4(%arg0: i32, %arg1: i32, %arg2: i32) -> (i32, i32, i32, i32) {
    %c0_i32 = arith.constant 0 : i32
    %c0_i32_0 = arith.constant 0 : i32
    %c0_i32_1 = arith.constant 0 : i32
    return %arg0, %arg1, %c0_i32, %c0_i32_0 : i32, i32, i32, i32
  }
}

</mosaic_0001>

<llo_original>
// kernel: tpu_custom_call.1
$region0: #{tpu_custom_call.1}
  #allocation0 [shape = 'u32[]', space=smem, size = 0x4, offset = 0x4, fixed_abs, tag = 'smem constant byte address 0x4 - core index']
  #allocation1 [shape = 'u32[72,128]{1,0:T(1,128)}', space=vmem, size = 0x9000, scoped, tag = 'internal scratch']
  #allocation2 [shape = 'f32[1]{0:T(128)S(6)}', space=smem, size = 0x200, scoped, tag = 'scoped memory for tpu_custom_call.1']
  %s0 = inlined_call_operand.<no memory space> [shape: f32[1], index: 0, kind: input, shape index: {}]
  %s1 = inlined_call_operand.hbm [shape: f32[2,16,512], index: 1, kind: input, shape index: {}]
  %s2 = inlined_call_operand.hbm [shape: f32[2,16,512], index: 2, kind: input, shape index: {}]
  %s3 = inlined_call_operand.hbm [shape: f32[1,512], index: 3, kind: input, shape index: {}]
  %s4 = inlined_call_operand.hbm [shape: f32[2,1,8,128], index: 4, kind: output, shape index: {}]
  %s5 = sld [smem:[#allocation0]]
  $region46: #{tpu_custom_call.1} parent=0
    _
  %s7 = ssub.s32 1, %s5
  %s8 = scalar_select 0, %s7, %s5
  %9 = sst [smem:[#allocation2]] %s0
  $region1: #{tpu_custom_call.1} parent=0
    #allocation3 [shape = 'u8[65536]{0}', space=vmem, size = 0x10000, scoped, tag = 'input window, operand 1, single buffered']
    #allocation4 [shape = 's32[1]{0}', space=sflag, size = 0x4, scoped, tag = 'scoped memory for tpu_custom_call.1']
    #allocation5 [shape = 's32[1]{0}', space=sflag, size = 0x4, scoped, tag = 'scoped memory for tpu_custom_call.1']
    #allocation6 [shape = 'u8[65536]{0}', space=vmem, size = 0x10000, scoped, tag = 'input window, operand 2, single buffered']
    #allocation7 [shape = 's32[1]{0}', space=sflag, size = 0x4, scoped, tag = 'scoped memory for tpu_custom_call.1']
    #allocation8 [shape = 'u8[2048]{0}', space=vmem, size = 0x800, scoped, tag = 'input window, operand 3, single buffered']
    #allocation9 [shape = 'u8[8192]{0}', space=vmem, size = 0x2000, scoped, tag = 'output window, operand 0, single buffered']
    %10 = vsyncpa [#allocation4], 0
    %11 = vsyncpa [#allocation7], 0
    %12 = vsyncpa [#allocation5], 0
    // Predicated region
    $region2: #{tpu_custom_call.1} parent=1 // pred_check
      _
    $region3: #{tpu_custom_call.1} parent=1 // pred_check_branch
      %14 = sbr.rel (0) target = $region5
    $region4: #{tpu_custom_call.1} parent=1 // pred_region
      _
    $region5: #{tpu_custom_call.1} parent=1 // pred_fallthru
      _
    // Predicated region
    $region6: #{tpu_custom_call.1} parent=1 // pred_check
      _
    $region7: #{tpu_custom_call.1} parent=1 // pred_check_branch
      %16 = sbr.rel (0) target = $region9
    $region8: #{tpu_custom_call.1} parent=1 // pred_region
      %s17 = sadd.s32 0, 0
      %s18 = smul.u32 2, %s17
      %20 = vsyncadd [#allocation4], 0
      %s21 = smul.addr %s18, 4
      %s22 = smul.addr %s21, 8
      %s23 = scalar_lea.hbm %s1, %s22
      %s24 = sshll.u32 %s23, 4
      %s25 = int_to_ptr.hbm [resolvable:$true] %s24
      %s26 = sshll.u32 [#allocation3], 4
      %s27 = int_to_ptr.vmem [resolvable:$true] %s26
      %32 = dma.hbm_to_vmem [thread:$0]  %s25, 2048, %s27, [#allocation4], 512, 512, 32
    $region9: #{tpu_custom_call.1} parent=1 // pred_fallthru
      _
    // Predicated region
    $region10: #{tpu_custom_call.1} parent=1 // pred_check
      _
    $region11: #{tpu_custom_call.1} parent=1 // pred_check_branch
      %34 = sbr.rel (0) target = $region13
    $region12: #{tpu_custom_call.1} parent=1 // pred_region
      %s35 = sadd.s32 0, 0
      %s36 = smul.u32 2, %s35
      %38 = vsyncadd [#allocation7], 0
      %s39 = smul.addr %s36, 4
      %s40 = smul.addr %s39, 8
      %s41 = scalar_lea.hbm %s2, %s40
      %s42 = sshll.u32 %s41, 4
      %s43 = int_to_ptr.hbm [resolvable:$true] %s42
      %s44 = sshll.u32 [#allocation6], 4
      %s45 = int_to_ptr.vmem [resolvable:$true] %s44
      %50 = dma.hbm_to_vmem [thread:$0]  %s43, 2048, %s45, [#allocation7], 512, 512, 32
    $region13: #{tpu_custom_call.1} parent=1 // pred_fallthru
      _
    // Predicated region
    $region14: #{tpu_custom_call.1} parent=1 // pred_check
      _
    $region15: #{tpu_custom_call.1} parent=1 // pred_check_branch
      %52 = sbr.rel (0) target = $region17
    $region16: #{tpu_custom_call.1} parent=1 // pred_region
      %54 = vsyncadd [#allocation7], 0
      %s56 = sshll.u32 %s3, 4
      %s57 = int_to_ptr.hbm [resolvable:$true] %s56
      %s58 = sshll.u32 [#allocation8], 4
      %s59 = int_to_ptr.vmem [resolvable:$true] %s58
      %61 = dma.hbm_to_vmem [thread:$0]  %s57, 64, %s59, [#allocation7]
    $region17: #{tpu_custom_call.1} parent=1 // pred_fallthru
      _
    // Predicated region
    $region18: #{tpu_custom_call.1} parent=1 // pred_check
      _
    $region19: #{tpu_custom_call.1} parent=1 // pred_check_branch
      %63 = sbr.rel (0) target = $region21
    $region20: #{tpu_custom_call.1} parent=1 // pred_region
      %65 = dma.done [#allocation4], 2048
    $region21: #{tpu_custom_call.1} parent=1 // pred_fallthru
      _
    // Predicated region
    $region22: #{tpu_custom_call.1} parent=1 // pred_check
      _
    $region23: #{tpu_custom_call.1} parent=1 // pred_check_branch
      %67 = sbr.rel (0) target = $region25
    $region24: #{tpu_custom_call.1} parent=1 // pred_region
      %69 = dma.done [#allocation7], 2048
    $region25: #{tpu_custom_call.1} parent=1 // pred_fallthru
      _
    // Predicated region
    $region26: #{tpu_custom_call.1} parent=1 // pred_check
      _
    $region27: #{tpu_custom_call.1} parent=1 // pred_check_branch
      %71 = sbr.rel (0) target = $region29
    $region28: #{tpu_custom_call.1} parent=1 // pred_region
      %73 = dma.done [#allocation7], 64
    $region29: #{tpu_custom_call.1} parent=1 // pred_fallthru
      _
    %s74 = sadd.s32 0, 0
    %s75 = smul.u32 2, %s74
    %s76 = sadd.s32 0, 0
    %s77 = smul.u32 2, %s76
    %p78 = scmp.eq.s32.totalorder 0, 0
    // Predicated region
    $region30: #{tpu_custom_call.1} parent=1 // pred_check
      %p79 = pneg %p78
    $region31: #{tpu_custom_call.1} parent=1 // pred_check_branch
      %81 = sbr.rel (%p79) target = $region33
    $region32: #{tpu_custom_call.1} parent=1 // pred_region
      %82 = vst [vmem:[#allocation9] sm:$0xff] -inf
      %83 = vst [vmem:[#allocation9 + $0x8] sm:$0xff] -inf
    $region33: #{tpu_custom_call.1} parent=1 // pred_fallthru
      _
    %v84 = vld [vmem:[#allocation3] sm:$0xff]
    %v85 = vld [vmem:[#allocation3 + $0x8] sm:$0xff]
    %v86 = vld [vmem:[#allocation3 + $0x10] sm:$0xff]
    %v87 = vld [vmem:[#allocation3 + $0x18] sm:$0xff]
    %v88 = vld [vmem:[#allocation3 + $0x20] sm:$0xff]
    %v89 = vld [vmem:[#allocation3 + $0x28] sm:$0xff]
    %v90 = vld [vmem:[#allocation3 + $0x30] sm:$0xff]
    %v91 = vld [vmem:[#allocation3 + $0x38] sm:$0xff]
    %v92 = vld [vmem:[#allocation3 + $0x40] sm:$0xff]
    %v93 = vld [vmem:[#allocation3 + $0x48] sm:$0xff]
    %v94 = vld [vmem:[#allocation3 + $0x50] sm:$0xff]
    %v95 = vld [vmem:[#allocation3 + $0x58] sm:$0xff]
    %v96 = vld [vmem:[#allocation3 + $0x60] sm:$0xff]
    %v97 = vld [vmem:[#allocation3 + $0x68] sm:$0xff]
    %v98 = vld [vmem:[#allocation3 + $0x70] sm:$0xff]
    %v99 = vld [vmem:[#allocation3 + $0x78] sm:$0xff]
    %v100 = vld [vmem:[#allocation6] sm:$0xff]
    %v101 = vld [vmem:[#allocation6 + $0x8] sm:$0xff]
    %v102 = vld [vmem:[#allocation6 + $0x10] sm:$0xff]
    %v103 = vld [vmem:[#allocation6 + $0x18] sm:$0xff]
    %v104 = vld [vmem:[#allocation6 + $0x20] sm:$0xff]
    %v105 = vld [vmem:[#allocation6 + $0x28] sm:$0xff]
    %v106 = vld [vmem:[#allocation6 + $0x30] sm:$0xff]
    %v107 = vld [vmem:[#allocation6 + $0x38] sm:$0xff]
    %v108 = vld [vmem:[#allocation6 + $0x40] sm:$0xff]
    %v109 = vld [vmem:[#allocation6 + $0x48] sm:$0xff]
    %v110 = vld [vmem:[#allocation6 + $0x50] sm:$0xff]
    %v111 = vld [vmem:[#allocation6 + $0x58] sm:$0xff]
    %v112 = vld [vmem:[#allocation6 + $0x60] sm:$0xff]
    %v113 = vld [vmem:[#allocation6 + $0x68] sm:$0xff]
    %v114 = vld [vmem:[#allocation6 + $0x70] sm:$0xff]
    %v115 = vld [vmem:[#allocation6 + $0x78] sm:$0xff]
    %v116 = vmul.f32 %v84, %v100
    %v117 = vmul.f32 %v85, %v101
    %v118 = vmul.f32 %v86, %v102
    %v119 = vmul.f32 %v87, %v103
    %v120 = vmul.f32 %v88, %v104
    %v121 = vmul.f32 %v89, %v105
    %v122 = vmul.f32 %v90, %v106
    %v123 = vmul.f32 %v91, %v107
    %v124 = vmul.f32 %v92, %v108
    %v125 = vmul.f32 %v93, %v109
    %v126 = vmul.f32 %v94, %v110
    %v127 = vmul.f32 %v95, %v111
    %v128 = vmul.f32 %v96, %v112
    %v129 = vmul.f32 %v97, %v113
    %v130 = vmul.f32 %v98, %v114
    %v131 = vmul.f32 %v99, %v115
    %v132 = vld [vmem:[#allocation8] sm:$0xf]
    %v134 = vperm.slane %v132, 0
    %v135 = vperm.slane %v132, 1
    %v136 = vperm.slane %v132, 2
    %v137 = vperm.slane %v132, 3
    %v142 = vmul.f32 %v116, %v134
    %v143 = vmul.f32 %v117, %v135
    %v144 = vmul.f32 %v118, %v136
    %v145 = vmul.f32 %v119, %v137
    %v146 = vmul.f32 %v120, %v134
    %v147 = vmul.f32 %v121, %v135
    %v148 = vmul.f32 %v122, %v136
    %v149 = vmul.f32 %v123, %v137
    %v150 = vmul.f32 %v124, %v134
    %v151 = vmul.f32 %v125, %v135
    %v152 = vmul.f32 %v126, %v136
    %v153 = vmul.f32 %v127, %v137
    %v154 = vmul.f32 %v128, %v134
    %v155 = vmul.f32 %v129, %v135
    %v156 = vmul.f32 %v130, %v136
    %v157 = vmul.f32 %v131, %v137
    %v158 = vadd.f32 %v142, %v143
    %v159 = vadd.f32 %v158, %v144
    %v160 = vadd.f32 %v159, %v145
    %161 = vadd.xlane.f32.xlu0 %v160
    %v162 = vpop.xlane.xlu0 %161
    %v163 = vadd.f32 %v146, %v147
    %v164 = vadd.f32 %v163, %v148
    %v165 = vadd.f32 %v164, %v149
    %166 = vadd.xlane.f32.xlu0 %v165
    %v167 = vpop.xlane.xlu0 %166
    %v168 = vadd.f32 %v150, %v151
    %v169 = vadd.f32 %v168, %v152
    %v170 = vadd.f32 %v169, %v153
    %171 = vadd.xlane.f32.xlu0 %v170
    %v172 = vpop.xlane.xlu0 %171
    %v173 = vadd.f32 %v154, %v155
    %v174 = vadd.f32 %v173, %v156
    %v175 = vadd.f32 %v174, %v157
    %176 = vadd.xlane.f32.xlu0 %v175
    %v177 = vpop.xlane.xlu0 %176
    %v182 = vlaneseq
    %v183 = vand.u32 %v182, 127
    %v184 = vperm.slane %v162, %v183
    %v185 = vadd.s32 %v183, 4294967288
    %v186 = vperm.slane %v167, %v185
    %vm187 = vcmask 130112
    %v188 = vsel %vm187, %v186, %v184
    %v189 = vperm.slane %v172, %v183
    %v190 = vperm.slane %v177, %v185
    %v191 = vsel %vm187, %v190, %v189
    %vm192 = vcmask 1041409
    %v193 = vsel %vm192, %v191, %v188
    %vm195 = vcmask 123904
    %v196 = vsel %vm195, %v193, -inf
    %197 = vmax.xlane.f32.xlu0 %v196
    %v198 = vpop.xlane.xlu0 %197
    %v200 = vperm.slane %v198, 0
    %v201 = vperm.slane %v198, 1
    %v204 = vld [vmem:[#allocation9] sm:$0xff]
    %v205 = vld [vmem:[#allocation9 + $0x8] sm:$0xff]
    %v206 = vmax.f32 %v204, %v200
    %v207 = vmax.f32 %v205, %v201
    %208 = vst [vmem:[#allocation9] sm:$0xff] %v206
    %209 = vst [vmem:[#allocation9 + $0x8] sm:$0xff] %v207
    // Predicated region
    $region34: #{tpu_custom_call.1} parent=1 // pred_check
      %p210 = pneg %p78
    $region35: #{tpu_custom_call.1} parent=1 // pred_check_branch
      %212 = sbr.rel (%p210) target = $region37
    $region36: #{tpu_custom_call.1} parent=1 // pred_region
      %v213 = vld [vmem:[#allocation9] sm:$0xff]
      %v214 = vld [vmem:[#allocation9 + $0x8] sm:$0xff]
      %s215 = sld [smem:[#allocation2]]
      %v216 = vstv %s215
      %v217 = vadd.f32 %v213, %v216
      %v218 = vadd.f32 %v214, %v216
      %219 = vst [vmem:[#allocation9] sm:$0xff] %v217
      %220 = vst [vmem:[#allocation9 + $0x8] sm:$0xff] %v218
    $region37: #{tpu_custom_call.1} parent=1 // pred_fallthru
      _
    // Predicated region
    $region38: #{tpu_custom_call.1} parent=1 // pred_check
      _
    $region39: #{tpu_custom_call.1} parent=1 // pred_check_branch
      %222 = sbr.rel (0) target = $region41
    $region40: #{tpu_custom_call.1} parent=1 // pred_region
      %224 = vsyncadd [#allocation5], 0
      %s225 = sshll.u32 [#allocation9], 4
      %s226 = int_to_ptr.vmem [resolvable:$true] %s225
      %s227 = sshll.u32 %s4, 4
      %s228 = int_to_ptr.hbm [resolvable:$true] %s227
      %233 = dma.vmem_to_hbm [thread:$0]  %s226, 256, %s228, [#allocation5], 128, 128, 8
    $region41: #{tpu_custom_call.1} parent=1 // pred_fallthru
      _
    // Predicated region
    $region42: #{tpu_custom_call.1} parent=1 // pred_check
      _
    $region43: #{tpu_custom_call.1} parent=1 // pred_check_branch
      %235 = sbr.rel (0) target = $region45
    $region44: #{tpu_custom_call.1} parent=1 // pred_region
      %237 = dma.done [#allocation5], 256
    $region45: #{tpu_custom_call.1} parent=1 // pred_fallthru
      _
    %238 = vsyncpa [#allocation4], 1
    %239 = vsyncpa [#allocation7], 1
    %240 = vsyncpa [#allocation5], 1

</llo_original>
